<compile_context>
chip_gen: v7x
topology: tpu7x:2x2x1
jax: 0.10.0
libtpu: 0.0.40
codegen_flags: <defaults>
</compile_context>

<pallas_src>
import jax
import jax.numpy as jnp
from jax.experimental import pallas as pl
from jax.experimental.pallas import tpu as pltpu

IN_DIM = 2
HID_DIM = 8
OUT_DIM = 3

X_PAD = 8        # IN_DIM + 1 (folded-bias column), padded to one sublane group
HID_PAD = 128    # hidden width padded to one lane group; column HID_DIM carries the "1" for b2
OUT_PAD = 8      # OUT_DIM padded to one sublane group (narrow masked store, but 16x fewer bytes)
SUB = 8          # f32 sublane granularity
MAX_TILE_B = 2048  # batch tile; working set (x + out tiles + (TILE_B,128) hidden) << VMEM


def _mlp_kernel(x_ref, w1_ref, w2_ref, o_ref):
    """One batch tile of the whole MLP.

    x_ref : (TILE_B, X_PAD)     [:, :2] = state, [:, 2] = 1.0 (bias column)
    w1_ref: (X_PAD, HID_PAD)    [:2, :8] = W1^T, [2, :8] = b1, [2, 8] = 1.0
    w2_ref: (HID_PAD, OUT_PAD)  [:8, :3] = W2^T, [8, :3] = b2
    o_ref : (TILE_B, OUT_PAD)   [:, :3] = logits
    """
    h = jnp.dot(x_ref[...], w1_ref[...], preferred_element_type=jnp.float32)
    h = jnp.maximum(h, 0.0)  # ReLU; relu(1) == 1 keeps the folded-bias column alive
    o_ref[...] = jnp.dot(h, w2_ref[...],
                         preferred_element_type=jnp.float32).astype(o_ref.dtype)


def pad_params(w1, b1, w2, b2):
    """Pad + bias-fold parameters ONCE (hoisted out of the per-step forward).

    w1: (8, 2), b1: (8,), w2: (3, 8), b2: (3,)  -- PyTorch nn.Linear layout.
    Returns (w1_p, w2_p) ready for policy_network_forward.
    """
    w1_p = jnp.zeros((X_PAD, HID_PAD), jnp.float32)
    w1_p = w1_p.at[:IN_DIM, :HID_DIM].set(w1.T.astype(jnp.float32))
    w1_p = w1_p.at[IN_DIM, :HID_DIM].set(b1.astype(jnp.float32))  # folded b1
    w1_p = w1_p.at[IN_DIM, HID_DIM].set(1.0)  # makes hidden column 8 == 1 (carries b2)

    w2_p = jnp.zeros((HID_PAD, OUT_PAD), jnp.float32)
    w2_p = w2_p.at[:HID_DIM, :OUT_DIM].set(w2.T.astype(jnp.float32))
    w2_p = w2_p.at[HID_DIM, :OUT_DIM].set(b2.astype(jnp.float32))  # folded b2
    return w1_p, w2_p


def _forward_impl(x, w1_p, w2_p):
    """x: (B, 2) f32, padded params from pad_params. Returns (B, 3) logits."""
    B = x.shape[0]
    b_rounded = max(SUB, ((B + SUB - 1) // SUB) * SUB)
    tile_b = min(MAX_TILE_B, b_rounded)            # whole (rounded) batch if small
    Bp = ((B + tile_b - 1) // tile_b) * tile_b
    grid = (Bp // tile_b,)

    # Minimal x padding: 2 feature lanes + 1 bias lane, rounded to 8.
    x_p = jnp.zeros((Bp, X_PAD), jnp.float32)
    x_p = x_p.at[:B, :IN_DIM].set(x.astype(jnp.float32))
    x_p = x_p.at[:B, IN_DIM].set(1.0)              # bias column

    out_p = pl.pallas_call(
        _mlp_kernel,
        out_shape=jax.ShapeDtypeStruct((Bp, OUT_PAD), jnp.float32),
        grid=grid,
        in_specs=[
            pl.BlockSpec((tile_b, X_PAD), lambda i: (i, 0)),      # streamed per tile
            pl.BlockSpec((X_PAD, HID_PAD), lambda i: (0, 0)),     # weights resident
            pl.BlockSpec((HID_PAD, OUT_PAD), lambda i: (0, 0)),   # weights resident
        ],
        out_specs=pl.BlockSpec((tile_b, OUT_PAD), lambda i: (i, 0)),
        compiler_params=pltpu.CompilerParams(
            dimension_semantics=("parallel",),  # batch tiles independent (megacore on v7x)
        ),
    )(x_p, w1_p, w2_p)

    return out_p[:B, :OUT_DIM]


policy_network_forward = jax.jit(_forward_impl)


def _init_params(key):
    """Deterministic init mimicking PyTorch nn.Linear (uniform +/- 1/sqrt(fan_in))."""
    k1, k2, k3, k4 = jax.random.split(key, 4)
    bound1 = 1.0 / jnp.sqrt(IN_DIM)
    bound2 = 1.0 / jnp.sqrt(HID_DIM)
    w1 = jax.random.uniform(k1, (HID_DIM, IN_DIM), jnp.float32, -bound1, bound1)
    b1 = jax.random.uniform(k2, (HID_DIM,), jnp.float32, -bound1, bound1)
    w2 = jax.random.uniform(k3, (OUT_DIM, HID_DIM), jnp.float32, -bound2, bound2)
    b2 = jax.random.uniform(k4, (OUT_DIM,), jnp.float32, -bound2, bound2)
    return w1, b1, w2, b2


def _reference_forward(x, w1, b1, w2, b2):
    h = jnp.maximum(x @ w1.T + b1, 0.0)
    return h @ w2.T + b2


if __name__ == "__main__":
    key = jax.random.PRNGKey(0)
    kx, kp = jax.random.split(key)

    batch = 4
    # MountainCar state is 2-d (position, velocity).
    x = jax.random.normal(kx, (batch, IN_DIM), jnp.float32)
    w1, b1, w2, b2 = _init_params(kp)

    # Padding / bias-folding happens once, outside the per-step forward.
    w1_p, w2_p = pad_params(w1, b1, w2, b2)

    logits = policy_network_forward(x, w1_p, w2_p)
    logits = jax.block_until_ready(logits)

    ref = _reference_forward(x, w1, b1, w2, b2)
    assert logits.shape == (batch, OUT_DIM)
    assert jnp.allclose(logits, ref, atol=1e-5, rtol=1e-5), (logits, ref)

    print("KERNEL_OK")
</pallas_src>

<mosaic_0001>
module attributes {stable_mosaic.version = 11 : i64} {
  func.func @_mlp_kernel(%arg0: i32, %arg1: memref<8x8xf32, #tpu.memory_space<vmem>>, %arg2: memref<8x128xf32, #tpu.memory_space<vmem>>, %arg3: memref<128x8xf32, #tpu.memory_space<vmem>>, %arg4: memref<8x8xf32, #tpu.memory_space<vmem>>) attributes {dimension_semantics = [#tpu.dimension_semantics<parallel>], iteration_bounds = array<i64: 1>, scalar_prefetch = 0 : i64, scratch_operands = 0 : i64, tpu.core_type = #tpu.core_type<tc>, window_params = [{transform_indices = @transform_0, window_bounds = array<i64: 8, 8>}, {pipeline_mode = #tpu.pipeline_mode<synchronous>, transform_indices = @transform_1, window_bounds = array<i64: 8, 128>}, {pipeline_mode = #tpu.pipeline_mode<synchronous>, transform_indices = @transform_2, window_bounds = array<i64: 128, 8>}, {transform_indices = @transform_3, window_bounds = array<i64: 8, 8>}]} {
    %c0 = arith.constant 0 : index
    %c0_0 = arith.constant 0 : index
    %0 = vector.load %arg1[%c0, %c0_0] : memref<8x8xf32, #tpu.memory_space<vmem>>, vector<8x8xf32>
    %c0_1 = arith.constant 0 : index
    %c0_2 = arith.constant 0 : index
    %1 = vector.load %arg2[%c0_1, %c0_2] : memref<8x128xf32, #tpu.memory_space<vmem>>, vector<8x128xf32>
    %cst = arith.constant dense<0.000000e+00> : vector<8x128xf32>
    %2 = tpu.matmul %0, %1, %cst {dimension_numbers = #tpu.dot_dimension_numbers<[1], [0], [0], [1], [0, 0, 1, 1], [], []>} : vector<8x8xf32>, vector<8x128xf32>, vector<8x128xf32> -> vector<8x128xf32>
    %cst_3 = arith.constant 0.000000e+00 : f32
    %3 = vector.broadcast %cst_3 : f32 to vector<8x128xf32>
    %4 = arith.maximumf %2, %3 : vector<8x128xf32>
    %c0_4 = arith.constant 0 : index
    %c0_5 = arith.constant 0 : index
    %5 = vector.load %arg3[%c0_4, %c0_5] : memref<128x8xf32, #tpu.memory_space<vmem>>, vector<128x8xf32>
    %cst_6 = arith.constant dense<0.000000e+00> : vector<8x8xf32>
    %6 = tpu.matmul %4, %5, %cst_6 {dimension_numbers = #tpu.dot_dimension_numbers<[1], [0], [0], [1], [0, 0, 1, 1], [], []>} : vector<8x128xf32>, vector<128x8xf32>, vector<8x8xf32> -> vector<8x8xf32>
    %c0_7 = arith.constant 0 : index
    %c0_8 = arith.constant 0 : index
    %7 = vector.load %arg4[%c0_7, %c0_8] : memref<8x8xf32, #tpu.memory_space<vmem>>, vector<8x8xf32>
    tpu.vector_store %arg4[%c0_7, %c0_8], %6 {strides = array<i32>} : memref<8x8xf32, #tpu.memory_space<vmem>>, vector<8x8xf32>,
    return
  }
  func.func @transform_0(%arg0: i32) -> (i32, i32) {
    %c0_i32 = arith.constant 0 : i32
    %c0_i32_0 = arith.constant 0 : i32
    return %arg0, %c0_i32 : i32, i32
  }
  func.func @transform_1(%arg0: i32) -> (i32, i32) {
    %c0_i32 = arith.constant 0 : i32
    %c0_i32_0 = arith.constant 0 : i32
    %c0_i32_1 = arith.constant 0 : i32
    return %c0_i32, %c0_i32_0 : i32, i32
  }
  func.func @transform_2(%arg0: i32) -> (i32, i32) {
    %c0_i32 = arith.constant 0 : i32
    %c0_i32_0 = arith.constant 0 : i32
    %c0_i32_1 = arith.constant 0 : i32
    return %c0_i32, %c0_i32_0 : i32, i32
  }
  func.func @transform_3(%arg0: i32) -> (i32, i32) {
    %c0_i32 = arith.constant 0 : i32
    %c0_i32_0 = arith.constant 0 : i32
    return %arg0, %c0_i32 : i32, i32
  }
}

</mosaic_0001>

<llo_original>
// kernel: _forward_impl.1
$region0: #{_forward_impl.1}
  #allocation0 [shape = 'u32[]', space=smem, size = 0x4, offset = 0x4, fixed_abs, tag = 'smem constant byte address 0x4 - core index']
  #allocation1 [shape = 'u32[144,128]{1,0:T(1,128)}', space=vmem, size = 0x12000, scoped, tag = 'internal scratch']
  %s0 = inlined_call_operand.vmem [shape: f32[8,8], index: 0, kind: input, shape index: {}]
  %s1 = inlined_call_operand.vmem [shape: f32[8,128], index: 1, kind: input, shape index: {}]
  %s2 = inlined_call_operand.vmem [shape: f32[128,8], index: 2, kind: input, shape index: {}]
  %s3 = inlined_call_operand.vmem [shape: f32[8,8], index: 3, kind: output, shape index: {}]
  %s4 = sld [smem:[#allocation0]]
  $region22: #{_forward_impl.1} parent=0
    _
  %s6 = ssub.s32 1, %s4
  %s7 = scalar_select 0, %s6, %s4
  // Predicated region
  $region2: #{_forward_impl.1} parent=0 // pred_check
    _
  $region3: #{_forward_impl.1} parent=0 // pred_check_branch
    %9 = sbr.rel (0) target = $region5
  $region4: #{_forward_impl.1} parent=0 // pred_region
    _
  $region5: #{_forward_impl.1} parent=0 // pred_fallthru
    _
  // Predicated region
  $region6: #{_forward_impl.1} parent=0 // pred_check
    _
  $region7: #{_forward_impl.1} parent=0 // pred_check_branch
    %11 = sbr.rel (0) target = $region9
  $region8: #{_forward_impl.1} parent=0 // pred_region
    _
  $region9: #{_forward_impl.1} parent=0 // pred_fallthru
    _
  // Predicated region
  $region10: #{_forward_impl.1} parent=0 // pred_check
    _
  $region11: #{_forward_impl.1} parent=0 // pred_check_branch
    %13 = sbr.rel (0) target = $region13
  $region12: #{_forward_impl.1} parent=0 // pred_region
    _
  $region13: #{_forward_impl.1} parent=0 // pred_fallthru
    _
  %v14 = vld [vmem:[%s0] sm:$0xff]
  %v15 = vld [vmem:[%s1] sm:$0xff]
  %vm16 = vcmask 64512
  %v18 = vsel %vm16, %v14, 0
  %20 = vmatprep.subr.mxu0 0.0
  %21 = vmatpush1.msra.mxu0 %v15
  %22 = vmatprep.subr.mxu0 0.0
  %23 = vmatpush1.msra.mxu0 0.0
  %24 = vmatprep.subr.mxu0 0.0
  %25 = vmatpush1.msra.mxu0 0.0
  %26 = vmatprep.subr.mxu0 0.0
  %27 = vmatpush1.msra.mxu0 0.0
  %28 = vmatprep.subr.mxu0 0.0
  %29 = vmatpush1.msra.mxu0 0.0
  %30 = vmatprep.subr.mxu0 0.0
  %31 = vmatpush1.msra.mxu0 0.0
  %32 = vmatprep.subr.mxu0 0.0
  %33 = vmatpush1.msra.mxu0 0.0
  %34 = vmatprep.subr.mxu0 0.0
  %35 = vmatpush1.msra.mxu0 0.0
  %36 = vmatprep.subr.mxu0 0.0
  %37 = vmatpush1.msra.mxu0 0.0
  %38 = vmatprep.subr.mxu0 0.0
  %39 = vmatpush1.msra.mxu0 0.0
  %40 = vmatprep.subr.mxu0 0.0
  %41 = vmatpush1.msra.mxu0 0.0
  %42 = vmatprep.subr.mxu0 0.0
  %43 = vmatpush1.msra.mxu0 0.0
  %44 = vmatprep.subr.mxu0 0.0
  %45 = vmatpush1.msra.mxu0 0.0
  %46 = vmatprep.subr.mxu0 0.0
  %47 = vmatpush1.msra.mxu0 0.0
  %48 = vmatprep.subr.mxu0 0.0
  %49 = vmatpush1.msra.mxu0 0.0
  %50 = vmatprep.subr.mxu0 0.0
  %51 = vmatpush1.msra.mxu0 0.0
  %52 = vmatprep.subr.mxu0 0.0
  %53 = vmatpush1.msra.mxu0 0.0
  %54 = vmatprep.subr.mxu0 0.0
  %55 = vmatpush1.msra.mxu0 0.0
  %56 = vmatprep.subr.mxu0 0.0
  %57 = vmatpush1.msra.mxu0 0.0
  %58 = vmatprep.subr.mxu0 0.0
  %59 = vmatpush1.msra.mxu0 0.0
  %60 = vmatprep.subr.mxu0 0.0
  %61 = vmatpush1.msra.mxu0 0.0
  %62 = vmatprep.subr.mxu0 0.0
  %63 = vmatpush1.msra.mxu0 0.0
  %64 = vmatprep.subr.mxu0 0.0
  %65 = vmatpush1.msra.mxu0 0.0
  %66 = vmatprep.subr.mxu0 0.0
  %67 = vmatpush1.msra.mxu0 0.0
  %68 = vmatprep.subr.mxu0 0.0
  %69 = vmatpush1.msra.mxu0 0.0
  %70 = vmatprep.subr.mxu0 0.0
  %71 = vmatpush1.msra.mxu0 0.0
  %72 = vmatprep.subr.mxu0 0.0
  %73 = vmatpush1.msra.mxu0 0.0
  %74 = vmatprep.subr.mxu0 0.0
  %75 = vmatpush1.msra.mxu0 0.0
  %76 = vmatprep.subr.mxu0 0.0
  %77 = vmatpush1.msra.mxu0 0.0
  %78 = vmatprep.subr.mxu0 0.0
  %79 = vmatpush1.msra.mxu0 0.0
  %80 = vmatprep.subr.mxu0 0.0
  %81 = vmatpush1.msra.mxu0 0.0
  %82 = vmatprep.subr.mxu0 0.0
  %83 = vmatpush1.msra.mxu0 0.0
  %84 = vmatprep.mubr.f32.mxu0 0.0
  %85 = vmatmul.mubr.f32.gmra.mrb[0].mxu0 %v18
  %v86 = vpop.f32.mrb[0].mxu0
  %v87 = vadd.f32 0.0, %v86
  %v88 = vpop.f32.mrb[0].mxu0
  %89 = vdwg.mxu0
  %v90 = vmax.f32 %v87, 0.0
  %v91 = vld [vmem:[%s2] sm:$0xff]
  %v92 = vld [vmem:[%s2 + $0x8] sm:$0xff]
  %v93 = vld [vmem:[%s2 + $0x10] sm:$0xff]
  %v94 = vld [vmem:[%s2 + $0x18] sm:$0xff]
  %v95 = vld [vmem:[%s2 + $0x20] sm:$0xff]
  %v96 = vld [vmem:[%s2 + $0x28] sm:$0xff]
  %v97 = vld [vmem:[%s2 + $0x30] sm:$0xff]
  %v98 = vld [vmem:[%s2 + $0x38] sm:$0xff]
  %v99 = vld [vmem:[%s2 + $0x40] sm:$0xff]
  %v100 = vld [vmem:[%s2 + $0x48] sm:$0xff]
  %v101 = vld [vmem:[%s2 + $0x50] sm:$0xff]
  %v102 = vld [vmem:[%s2 + $0x58] sm:$0xff]
  %v103 = vld [vmem:[%s2 + $0x60] sm:$0xff]
  %v104 = vld [vmem:[%s2 + $0x68] sm:$0xff]
  %v105 = vld [vmem:[%s2 + $0x70] sm:$0xff]
  %v106 = vld [vmem:[%s2 + $0x78] sm:$0xff]
  %107 = vmatprep.subr.mxu0 0.0
  %108 = vmatpush1.msra.mxu0 %v91
  %109 = vmatprep.subr.mxu0 0.0
  %110 = vmatpush1.msra.mxu0 %v92
  %111 = vmatprep.subr.mxu0 0.0
  %112 = vmatpush1.msra.mxu0 %v93
  %113 = vmatprep.subr.mxu0 0.0
  %114 = vmatpush1.msra.mxu0 %v94
  %115 = vmatprep.subr.mxu0 0.0
  %116 = vmatpush1.msra.mxu0 %v95
  %117 = vmatprep.subr.mxu0 0.0
  %118 = vmatpush1.msra.mxu0 %v96
  %119 = vmatprep.subr.mxu0 0.0
  %120 = vmatpush1.msra.mxu0 %v97
  %121 = vmatprep.subr.mxu0 0.0
  %122 = vmatpush1.msra.mxu0 %v98
  %123 = vmatprep.subr.mxu0 0.0
  %124 = vmatpush1.msra.mxu0 %v99
  %125 = vmatprep.subr.mxu0 0.0
  %126 = vmatpush1.msra.mxu0 %v100
  %127 = vmatprep.subr.mxu0 0.0
  %128 = vmatpush1.msra.mxu0 %v101
  %129 = vmatprep.subr.mxu0 0.0
  %130 = vmatpush1.msra.mxu0 %v102
  %131 = vmatprep.subr.mxu0 0.0
  %132 = vmatpush1.msra.mxu0 %v103
  %133 = vmatprep.subr.mxu0 0.0
  %134 = vmatpush1.msra.mxu0 %v104
  %135 = vmatprep.subr.mxu0 0.0
  %136 = vmatpush1.msra.mxu0 %v105
  %137 = vmatprep.subr.mxu0 0.0
  %138 = vmatpush1.msra.mxu0 %v106
  %139 = vmatprep.subr.mxu0 0.0
  %140 = vmatpush1.msra.mxu0 0.0
  %141 = vmatprep.subr.mxu0 0.0
  %142 = vmatpush1.msra.mxu0 0.0
  %143 = vmatprep.subr.mxu0 0.0
  %144 = vmatpush1.msra.mxu0 0.0
  %145 = vmatprep.subr.mxu0 0.0
  %146 = vmatpush1.msra.mxu0 0.0
  %147 = vmatprep.subr.mxu0 0.0
  %148 = vmatpush1.msra.mxu0 0.0
  %149 = vmatprep.subr.mxu0 0.0
  %150 = vmatpush1.msra.mxu0 0.0
  %151 = vmatprep.subr.mxu0 0.0
  %152 = vmatpush1.msra.mxu0 0.0
  %153 = vmatprep.subr.mxu0 0.0
  %154 = vmatpush1.msra.mxu0 0.0
  %155 = vmatprep.subr.mxu0 0.0
  %156 = vmatpush1.msra.mxu0 0.0
  %157 = vmatprep.subr.mxu0 0.0
  %158 = vmatpush1.msra.mxu0 0.0
  %159 = vmatprep.subr.mxu0 0.0
  %160 = vmatpush1.msra.mxu0 0.0
  %161 = vmatprep.subr.mxu0 0.0
  %162 = vmatpush1.msra.mxu0 0.0
  %163 = vmatprep.subr.mxu0 0.0
  %164 = vmatpush1.msra.mxu0 0.0
  %165 = vmatprep.subr.mxu0 0.0
  %166 = vmatpush1.msra.mxu0 0.0
  %167 = vmatprep.subr.mxu0 0.0
  %168 = vmatpush1.msra.mxu0 0.0
  %169 = vmatprep.subr.mxu0 0.0
  %170 = vmatpush1.msra.mxu0 0.0
  %171 = vmatprep.mubr.f32.mxu0 0.0
  %172 = vmatmul.mubr.f32.gmra.mrb[0].mxu0 %v90
  %v173 = vpop.f32.mrb[0].mxu0
  %v174 = vadd.f32 0.0, %v173
  %v175 = vpop.f32.mrb[0].mxu0
  %176 = vdwg.mxu0
  %177 = vst.msk [vmem:[%s3] sm:$0xff] %vm16, %v174
  // Predicated region
  $region14: #{_forward_impl.1} parent=0 // pred_check
    _
  $region15: #{_forward_impl.1} parent=0 // pred_check_branch
    %179 = sbr.rel (0) target = $region17
  $region16: #{_forward_impl.1} parent=0 // pred_region
    _
  $region17: #{_forward_impl.1} parent=0 // pred_fallthru
    _
  // Predicated region
  $region18: #{_forward_impl.1} parent=0 // pred_check
    _
  $region19: #{_forward_impl.1} parent=0 // pred_check_branch
    %181 = sbr.rel (0) target = $region21
  $region20: #{_forward_impl.1} parent=0 // pred_region
    _
  $region21: #{_forward_impl.1} parent=0 // pred_fallthru
    _

</llo_original>
